<compile_context>
chip_gen: v5e
topology: v5e:2x2
jax: 0.10.0
libtpu: 0.0.40
codegen_flags: <defaults>
</compile_context>

<pallas_src>
import functools

import jax
import jax.numpy as jnp
from jax.experimental import pallas as pl
from jax.experimental.pallas import tpu as pltpu

EPS = 1e-5  # nn.LayerNorm default


def _ln(x, g, b):
    """LayerNorm over last dim, fp32."""
    mu = jnp.mean(x, axis=-1, keepdims=True)
    var = jnp.mean(jnp.square(x - mu), axis=-1, keepdims=True)
    return (x - mu) * jax.lax.rsqrt(var + EPS) * g + b


# --------------------------------------------------------------------------
# Kernel 1: LN1 + QKV projection + causal MHA + out-projection + residual
# --------------------------------------------------------------------------
def _attn_block_kernel(x_ref, g1_ref, b1_ref, inw_ref, inb_ref,
                       outw_ref, outb_ref, o_ref, attn_buf, *, n_heads):
    x = x_ref[0]                                    # (L, D) fp32 residual input
    L, D = x.shape
    Dh = D // n_heads
    scale = 1.0 / float(Dh) ** 0.5

    h = _ln(x, g1_ref[...], b1_ref[...])            # fp32
    qkv = jnp.dot(h.astype(jnp.bfloat16), inw_ref[...],
                  preferred_element_type=jnp.float32) + inb_ref[...]   # (L, 3D) f32

    row = jax.lax.broadcasted_iota(jnp.int32, (L, L), 0)
    col = jax.lax.broadcasted_iota(jnp.int32, (L, L), 1)
    neg = jnp.where(col > row, jnp.float32(-1e30), jnp.float32(0.0))   # causal mask

    # Static per-head loop: no extra grid steps, no host-side transposes.
    for hd in range(n_heads):
        # Fold 1/sqrt(Dh) into q (L*Dh elems) instead of the L*L score matrix.
        q = (qkv[:, hd * Dh:(hd + 1) * Dh] * scale).astype(jnp.bfloat16)
        k = qkv[:, D + hd * Dh: D + (hd + 1) * Dh].astype(jnp.bfloat16)
        v = qkv[:, 2 * D + hd * Dh: 2 * D + (hd + 1) * Dh].astype(jnp.bfloat16)
        # q @ k^T without materializing a transpose (contract last dims).
        s = jax.lax.dot_general(q, k, (((1,), (1,)), ((), ())),
                                preferred_element_type=jnp.float32) + neg
        s = s - jnp.max(s, axis=-1, keepdims=True)
        p = jnp.exp(s)
        inv = pl.reciprocal(jnp.sum(p, axis=-1, keepdims=True), approx=True)
        o = jnp.dot(p.astype(jnp.bfloat16), v,
                    preferred_element_type=jnp.float32) * inv
        attn_buf[:, hd * Dh:(hd + 1) * Dh] = o.astype(jnp.bfloat16)

    y = jnp.dot(attn_buf[...], outw_ref[...], preferred_element_type=jnp.float32)
    o_ref[0] = x + y + outb_ref[...]                # residual add fused in


def attention_block(x, lp, n_heads):
    N, L, D = x.shape
    return pl.pallas_call(
        functools.partial(_attn_block_kernel, n_heads=n_heads),
        grid=(N,),
        in_specs=[
            pl.BlockSpec((1, L, D), lambda n: (n, 0, 0)),
            pl.BlockSpec((1, D), lambda n: (0, 0)),
            pl.BlockSpec((1, D), lambda n: (0, 0)),
            pl.BlockSpec((D, 3 * D), lambda n: (0, 0)),
            pl.BlockSpec((1, 3 * D), lambda n: (0, 0)),
            pl.BlockSpec((D, D), lambda n: (0, 0)),
            pl.BlockSpec((1, D), lambda n: (0, 0)),
        ],
        out_specs=pl.BlockSpec((1, L, D), lambda n: (n, 0, 0)),
        out_shape=jax.ShapeDtypeStruct((N, L, D), jnp.float32),
        scratch_shapes=[pltpu.VMEM((L, D), jnp.bfloat16)],
        compiler_params=pltpu.CompilerParams(dimension_semantics=("parallel",)),
    )(x, lp["ln1_g"].reshape(1, D), lp["ln1_b"].reshape(1, D),
      lp["in_w"], lp["in_b"].reshape(1, 3 * D),
      lp["out_w"], lp["out_b"].reshape(1, D))


# --------------------------------------------------------------------------
# Kernel 2: LN2 + fc + QuickGELU + proj + residual
# --------------------------------------------------------------------------
def _mlp_block_kernel(x_ref, g2_ref, b2_ref, fcw_ref, fcb_ref,
                      pw_ref, pb_ref, o_ref):
    x = x_ref[0]                                    # (L, D) fp32
    h = _ln(x, g2_ref[...], b2_ref[...])
    u = jnp.dot(h.astype(jnp.bfloat16), fcw_ref[...],
                preferred_element_type=jnp.float32) + fcb_ref[...]
    u = u * jax.nn.sigmoid(1.702 * u)               # QuickGELU, fp32 (EUP)
    y = jnp.dot(u.astype(jnp.bfloat16), pw_ref[...],
                preferred_element_type=jnp.float32) + pb_ref[...]
    o_ref[0] = x + y                                # residual add fused in


def mlp_block(x, lp):
    N, L, D = x.shape
    F = lp["fc_w"].shape[1]
    return pl.pallas_call(
        _mlp_block_kernel,
        grid=(N,),
        in_specs=[
            pl.BlockSpec((1, L, D), lambda n: (n, 0, 0)),
            pl.BlockSpec((1, D), lambda n: (0, 0)),
            pl.BlockSpec((1, D), lambda n: (0, 0)),
            pl.BlockSpec((D, F), lambda n: (0, 0)),
            pl.BlockSpec((1, F), lambda n: (0, 0)),
            pl.BlockSpec((F, D), lambda n: (0, 0)),
            pl.BlockSpec((1, D), lambda n: (0, 0)),
        ],
        out_specs=pl.BlockSpec((1, L, D), lambda n: (n, 0, 0)),
        out_shape=jax.ShapeDtypeStruct((N, L, D), jnp.float32),
        compiler_params=pltpu.CompilerParams(dimension_semantics=("parallel",)),
    )(x, lp["ln2_g"].reshape(1, D), lp["ln2_b"].reshape(1, D),
      lp["fc_w"], lp["fc_b"].reshape(1, F),
      lp["proj_w"], lp["proj_b"].reshape(1, D))


# --------------------------------------------------------------------------
# Kernel 3 (tail): LN_final + text_projection on the N gathered EOT rows only
# --------------------------------------------------------------------------
def _head_kernel(x_ref, g_ref, b_ref, w_ref, o_ref):
    h = _ln(x_ref[...], g_ref[...], b_ref[...])
    o_ref[...] = jnp.dot(h.astype(jnp.bfloat16), w_ref[...],
                         preferred_element_type=jnp.float32)


def final_ln_project(x_eot, g, b, w):
    N, D = x_eot.shape
    E = w.shape[1]
    return pl.pallas_call(
        _head_kernel,
        grid=(1,),
        in_specs=[
            pl.BlockSpec((N, D), lambda i: (0, 0)),
            pl.BlockSpec((1, D), lambda i: (0, 0)),
            pl.BlockSpec((1, D), lambda i: (0, 0)),
            pl.BlockSpec((D, E), lambda i: (0, 0)),
        ],
        out_specs=pl.BlockSpec((N, E), lambda i: (0, 0)),
        out_shape=jax.ShapeDtypeStruct((N, E), jnp.float32),
    )(x_eot, g.reshape(1, D), b.reshape(1, D), w)


# --------------------------------------------------------------------------
# TextEncoder forward (glue in plain JAX, all heavy lifting in Pallas kernels)
# --------------------------------------------------------------------------
def text_encoder(params, prompts, tokenized_prompts, n_heads):
    N, L, D = prompts.shape
    x = prompts + params["pos_emb"][None]           # prompts + positional_embedding
    for lp in params["layers"]:                     # clip_model.transformer
        x = attention_block(x, lp, n_heads)         # x = x + attn(ln_1(x))
        x = mlp_block(x, lp)                        # x = x + mlp(ln_2(x))
    # EOT token = highest token id; gather FIRST, then LN + project only N rows.
    eot = jnp.argmax(tokenized_prompts, axis=-1)
    x_eot = x[jnp.arange(N), eot]                   # (N, D) gather (host glue)
    return final_ln_project(x_eot, params["ln_f_g"], params["ln_f_b"],
                            params["text_proj"])


# --------------------------------------------------------------------------
# Pure-JAX fp32 reference (same bf16-stored weights, fp32 math)
# --------------------------------------------------------------------------
def reference_text_encoder(params, prompts, tokenized_prompts, n_heads):
    def ln(x, g, b):
        mu = jnp.mean(x, axis=-1, keepdims=True)
        var = jnp.mean((x - mu) ** 2, axis=-1, keepdims=True)
        return (x - mu) / jnp.sqrt(var + EPS) * g + b

    f32 = lambda a: a.astype(jnp.float32)
    N, L, D = prompts.shape
    Dh = D // n_heads
    x = prompts + params["pos_emb"][None]
    mask = jnp.triu(jnp.full((L, L), -1e30, jnp.float32), k=1)
    for lp in params["layers"]:
        h = ln(x, lp["ln1_g"], lp["ln1_b"])
        qkv = (h @ f32(lp["in_w"]) + lp["in_b"]).reshape(N, L, 3, n_heads, Dh)
        q = jnp.transpose(qkv[:, :, 0], (0, 2, 1, 3))
        k = jnp.transpose(qkv[:, :, 1], (0, 2, 1, 3))
        v = jnp.transpose(qkv[:, :, 2], (0, 2, 1, 3))
        s = jnp.einsum("bhqd,bhkd->bhqk", q, k) / jnp.sqrt(jnp.float32(Dh)) + mask
        p = jax.nn.softmax(s, axis=-1)
        o = jnp.einsum("bhqk,bhkd->bhqd", p, v)
        o = jnp.transpose(o, (0, 2, 1, 3)).reshape(N, L, D)
        x = x + o @ f32(lp["out_w"]) + lp["out_b"]
        h = ln(x, lp["ln2_g"], lp["ln2_b"])
        h = h @ f32(lp["fc_w"]) + lp["fc_b"]
        h = h * jax.nn.sigmoid(1.702 * h)
        x = x + h @ f32(lp["proj_w"]) + lp["proj_b"]
    x = ln(x, params["ln_f_g"], params["ln_f_b"])
    eot = jnp.argmax(tokenized_prompts, axis=-1)
    return x[jnp.arange(N), eot] @ f32(params["text_proj"])


# --------------------------------------------------------------------------
# Deterministic parameter init (shapes follow CLIP text transformer)
# --------------------------------------------------------------------------
def init_params(key, n_layers, L, D, E):
    keys = jax.random.split(key, 2 + n_layers)

    def nrm(k, shape, scale=0.02, dtype=jnp.float32):
        return (scale * jax.random.normal(k, shape)).astype(dtype)

    bf = jnp.bfloat16  # matmul weights stored in bf16 (CLIP runs fp16 natively)
    params = {
        "pos_emb": nrm(keys[0], (L, D)),
        "text_proj": nrm(keys[1], (D, E), dtype=bf),
        "ln_f_g": jnp.ones((D,), jnp.float32),
        "ln_f_b": jnp.zeros((D,), jnp.float32),
        "layers": [],
    }
    for i in range(n_layers):
        lk = jax.random.split(keys[2 + i], 5)
        params["layers"].append({
            "ln1_g": jnp.ones((D,), jnp.float32), "ln1_b": jnp.zeros((D,), jnp.float32),
            "in_w": nrm(lk[0], (D, 3 * D), dtype=bf), "in_b": nrm(lk[1], (3 * D,)),
            "out_w": nrm(lk[2], (D, D), dtype=bf), "out_b": jnp.zeros((D,), jnp.float32),
            "ln2_g": jnp.ones((D,), jnp.float32), "ln2_b": jnp.zeros((D,), jnp.float32),
            "fc_w": nrm(lk[3], (D, 4 * D), dtype=bf), "fc_b": jnp.zeros((4 * D,), jnp.float32),
            "proj_w": nrm(lk[4], (4 * D, D), dtype=bf), "proj_b": jnp.zeros((D,), jnp.float32),
        })
    return params


if __name__ == "__main__":
    N, L, D, H, E, NLAYERS = 2, 8, 32, 4, 16, 2  # batch, seq, width, heads, proj, layers
    key = jax.random.PRNGKey(0)
    kp, kx, kt = jax.random.split(key, 3)

    params = init_params(kp, NLAYERS, L, D, E)
    prompts = (0.02 * jax.random.normal(kx, (N, L, D))).astype(jnp.float32)
    # token ids: EOT (largest id) placed at different positions per prompt
    tokenized_prompts = jax.random.randint(kt, (N, L), 1, 100).astype(jnp.int32)
    eot_pos = jnp.array([5, 7], dtype=jnp.int32)
    tokenized_prompts = tokenized_prompts.at[jnp.arange(N), eot_pos].set(49407)

    out = text_encoder(params, prompts, tokenized_prompts, H)
    out = jax.block_until_ready(out)

    ref = reference_text_encoder(params, prompts, tokenized_prompts, H)
    assert out.shape == (N, E), out.shape
    # bf16 matmul inputs with fp32 accumulation vs fp32 reference -> ~1e-2 tol.
    assert jnp.allclose(out, ref, atol=1e-2, rtol=1e-2), jnp.max(jnp.abs(out - ref))
    print("KERNEL_OK")
</pallas_src>

<mosaic_0001>
module attributes {stable_mosaic.version = 11 : i64} {
  func.func @_attn_block_kernel(%arg0: i32, %arg1: memref<1x8x32xf32, #tpu.memory_space<vmem>>, %arg2: memref<1x32xf32, #tpu.memory_space<vmem>>, %arg3: memref<1x32xf32, #tpu.memory_space<vmem>>, %arg4: memref<32x96xbf16, #tpu.memory_space<vmem>>, %arg5: memref<1x96xf32, #tpu.memory_space<vmem>>, %arg6: memref<32x32xbf16, #tpu.memory_space<vmem>>, %arg7: memref<1x32xf32, #tpu.memory_space<vmem>>, %arg8: memref<1x8x32xf32, #tpu.memory_space<vmem>>, %arg9: memref<8x32xbf16, #tpu.memory_space<vmem>>) attributes {dimension_semantics = [#tpu.dimension_semantics<parallel>], iteration_bounds = array<i64: 2>, scalar_prefetch = 0 : i64, scratch_operands = 1 : i64, tpu.core_type = #tpu.core_type<tc>, window_params = [{transform_indices = @transform_0, window_bounds = array<i64: 1, 8, 32>}, {pipeline_mode = #tpu.pipeline_mode<synchronous>, transform_indices = @transform_1, window_bounds = array<i64: 1, 32>}, {pipeline_mode = #tpu.pipeline_mode<synchronous>, transform_indices = @transform_2, window_bounds = array<i64: 1, 32>}, {pipeline_mode = #tpu.pipeline_mode<synchronous>, transform_indices = @transform_3, window_bounds = array<i64: 32, 96>}, {pipeline_mode = #tpu.pipeline_mode<synchronous>, transform_indices = @transform_4, window_bounds = array<i64: 1, 96>}, {pipeline_mode = #tpu.pipeline_mode<synchronous>, transform_indices = @transform_5, window_bounds = array<i64: 32, 32>}, {pipeline_mode = #tpu.pipeline_mode<synchronous>, transform_indices = @transform_6, window_bounds = array<i64: 1, 32>}, {transform_indices = @transform_7, window_bounds = array<i64: 1, 8, 32>}]} {
    %c0 = arith.constant 0 : index
    %c0_0 = arith.constant 0 : index
    %c0_1 = arith.constant 0 : index
    %0 = vector.load %arg1[%c0, %c0_0, %c0_1] : memref<1x8x32xf32, #tpu.memory_space<vmem>>, vector<1x8x32xf32>
    %1 = vector.shape_cast %0 : vector<1x8x32xf32> to vector<8x32xf32>
    %c0_2 = arith.constant 0 : index
    %c0_3 = arith.constant 0 : index
    %2 = vector.load %arg2[%c0_2, %c0_3] : memref<1x32xf32, #tpu.memory_space<vmem>>, vector<1x32xf32>
    %c0_4 = arith.constant 0 : index
    %c0_5 = arith.constant 0 : index
    %3 = vector.load %arg3[%c0_4, %c0_5] : memref<1x32xf32, #tpu.memory_space<vmem>>, vector<1x32xf32>
    %cst = arith.constant dense<0.000000e+00> : vector<8xf32>
    %4 = vector.multi_reduction <add>, %1, %cst [1] : vector<8x32xf32> to vector<8xf32>
    %5 = vector.shape_cast %4 : vector<8xf32> to vector<8x1xf32>
    %cst_6 = arith.constant 3.200000e+01 : f32
    %6 = vector.broadcast %cst_6 : f32 to vector<8x1xf32>
    %7 = arith.divf %5, %6 : vector<8x1xf32>
    %8 = vector.broadcast %7 : vector<8x1xf32> to vector<8x32xf32>
    %9 = arith.subf %1, %8 : vector<8x32xf32>
    %10 = arith.mulf %9, %9 : vector<8x32xf32>
    %cst_7 = arith.constant dense<0.000000e+00> : vector<8xf32>
    %11 = vector.multi_reduction <add>, %10, %cst_7 [1] : vector<8x32xf32> to vector<8xf32>
    %12 = vector.shape_cast %11 : vector<8xf32> to vector<8x1xf32>
    %cst_8 = arith.constant 3.200000e+01 : f32
    %13 = vector.broadcast %cst_8 : f32 to vector<8x1xf32>
    %14 = arith.divf %12, %13 : vector<8x1xf32>
    %15 = vector.broadcast %7 : vector<8x1xf32> to vector<8x32xf32>
    %16 = arith.subf %1, %15 : vector<8x32xf32>
    %cst_9 = arith.constant 9.99999974E-6 : f32
    %17 = vector.broadcast %cst_9 : f32 to vector<8x1xf32>
    %18 = arith.addf %14, %17 : vector<8x1xf32>
    %19 = math.rsqrt %18 : vector<8x1xf32>
    %20 = vector.broadcast %19 : vector<8x1xf32> to vector<8x32xf32>
    %21 = arith.mulf %16, %20 : vector<8x32xf32>
    %22 = vector.broadcast %2 : vector<1x32xf32> to vector<8x32xf32>
    %23 = arith.mulf %21, %22 : vector<8x32xf32>
    %24 = vector.broadcast %3 : vector<1x32xf32> to vector<8x32xf32>
    %25 = arith.addf %23, %24 : vector<8x32xf32>
    %26 = arith.truncf %25 : vector<8x32xf32> to vector<8x32xbf16>
    %c0_10 = arith.constant 0 : index
    %c0_11 = arith.constant 0 : index
    %27 = vector.load %arg4[%c0_10, %c0_11] : memref<32x96xbf16, #tpu.memory_space<vmem>>, vector<32x96xbf16>
    %cst_12 = arith.constant dense<0.000000e+00> : vector<8x96xf32>
    %28 = tpu.matmul %26, %27, %cst_12 {dimension_numbers = #tpu.dot_dimension_numbers<[1], [0], [0], [1], [0, 0, 1, 1], [], []>} : vector<8x32xbf16>, vector<32x96xbf16>, vector<8x96xf32> -> vector<8x96xf32>
    %c0_13 = arith.constant 0 : index
    %c0_14 = arith.constant 0 : index
    %29 = vector.load %arg5[%c0_13, %c0_14] : memref<1x96xf32, #tpu.memory_space<vmem>>, vector<1x96xf32>
    %30 = vector.broadcast %29 : vector<1x96xf32> to vector<8x96xf32>
    %31 = arith.addf %28, %30 : vector<8x96xf32>
    %32 = tpu.iota {dimensions = array<i32: 0>} : vector<8x8xi32>
    %33 = tpu.iota {dimensions = array<i32: 1>} : vector<8x8xi32>
    %34 = arith.cmpi sgt, %33, %32 : vector<8x8xi32>
    %cst_15 = arith.constant -1.000000e+30 : f32
    %cst_16 = arith.constant 0.000000e+00 : f32
    %35 = vector.broadcast %cst_15 : f32 to vector<8x8xf32>
    %36 = vector.broadcast %cst_16 : f32 to vector<8x8xf32>
    %37 = arith.select %34, %35, %36 : vector<8x8xi1>, vector<8x8xf32>
    %38 = vector.extract_strided_slice %31 {offsets = [0, 0], sizes = [8, 8], strides = [1, 1]} : vector<8x96xf32> to vector<8x8xf32>
    %cst_17 = arith.constant 0.353553385 : f32
    %39 = vector.broadcast %cst_17 : f32 to vector<8x8xf32>
    %40 = arith.mulf %38, %39 : vector<8x8xf32>
    %41 = arith.truncf %40 : vector<8x8xf32> to vector<8x8xbf16>
    %42 = vector.extract_strided_slice %31 {offsets = [0, 32], sizes = [8, 8], strides = [1, 1]} : vector<8x96xf32> to vector<8x8xf32>
    %43 = arith.truncf %42 : vector<8x8xf32> to vector<8x8xbf16>
    %44 = vector.extract_strided_slice %31 {offsets = [0, 64], sizes = [8, 8], strides = [1, 1]} : vector<8x96xf32> to vector<8x8xf32>
    %45 = arith.truncf %44 : vector<8x8xf32> to vector<8x8xbf16>
    %cst_18 = arith.constant dense<0.000000e+00> : vector<8x8xf32>
    %46 = tpu.matmul %41, %43, %cst_18 {dimension_numbers = #tpu.dot_dimension_numbers<[1], [1], [0], [0], [0, 0, 1, 0], [], []>} : vector<8x8xbf16>, vector<8x8xbf16>, vector<8x8xf32> -> vector<8x8xf32>
    %47 = arith.addf %46, %37 : vector<8x8xf32>
    %cst_19 = arith.constant dense<0xFF800000> : vector<8xf32>
    %48 = vector.multi_reduction <maximumf>, %47, %cst_19 [1] : vector<8x8xf32> to vector<8xf32>
    %49 = vector.shape_cast %48 : vector<8xf32> to vector<8x1xf32>
    %50 = vector.broadcast %49 : vector<8x1xf32> to vector<8x8xf32>
    %51 = arith.subf %47, %50 : vector<8x8xf32>
    %52 = math.exp %51 : vector<8x8xf32>
    %cst_20 = arith.constant dense<0.000000e+00> : vector<8xf32>
    %53 = vector.multi_reduction <add>, %52, %cst_20 [1] : vector<8x8xf32> to vector<8xf32>
    %54 = vector.shape_cast %53 : vector<8xf32> to vector<8x1xf32>
    %55 = tpu.reciprocal %54 {approx = true} : vector<8x1xf32> -> vector<8x1xf32>
    %56 = arith.truncf %52 : vector<8x8xf32> to vector<8x8xbf16>
    %cst_21 = arith.constant dense<0.000000e+00> : vector<8x8xf32>
    %57 = tpu.matmul %56, %45, %cst_21 {dimension_numbers = #tpu.dot_dimension_numbers<[1], [0], [0], [1], [0, 0, 1, 1], [], []>} : vector<8x8xbf16>, vector<8x8xbf16>, vector<8x8xf32> -> vector<8x8xf32>
    %58 = vector.broadcast %55 : vector<8x1xf32> to vector<8x8xf32>
    %59 = arith.mulf %57, %58 : vector<8x8xf32>
    %60 = arith.truncf %59 : vector<8x8xf32> to vector<8x8xbf16>
    %c0_22 = arith.constant 0 : index
    %c0_23 = arith.constant 0 : index
    %61 = vector.load %arg9[%c0_22, %c0_23] : memref<8x32xbf16, #tpu.memory_space<vmem>>, vector<8x8xbf16>
    tpu.vector_store %arg9[%c0_22, %c0_23], %60 {strides = array<i32>} : memref<8x32xbf16, #tpu.memory_space<vmem>>, vector<8x8xbf16>,
    %62 = vector.extract_strided_slice %31 {offsets = [0, 8], sizes = [8, 8], strides = [1, 1]} : vector<8x96xf32> to vector<8x8xf32>
    %cst_24 = arith.constant 0.353553385 : f32
    %63 = vector.broadcast %cst_24 : f32 to vector<8x8xf32>
    %64 = arith.mulf %62, %63 : vector<8x8xf32>
    %65 = arith.truncf %64 : vector<8x8xf32> to vector<8x8xbf16>
    %66 = vector.extract_strided_slice %31 {offsets = [0, 40], sizes = [8, 8], strides = [1, 1]} : vector<8x96xf32> to vector<8x8xf32>
    %67 = arith.truncf %66 : vector<8x8xf32> to vector<8x8xbf16>
    %68 = vector.extract_strided_slice %31 {offsets = [0, 72], sizes = [8, 8], strides = [1, 1]} : vector<8x96xf32> to vector<8x8xf32>
    %69 = arith.truncf %68 : vector<8x8xf32> to vector<8x8xbf16>
    %cst_25 = arith.constant dense<0.000000e+00> : vector<8x8xf32>
    %70 = tpu.matmul %65, %67, %cst_25 {dimension_numbers = #tpu.dot_dimension_numbers<[1], [1], [0], [0], [0, 0, 1, 0], [], []>} : vector<8x8xbf16>, vector<8x8xbf16>, vector<8x8xf32> -> vector<8x8xf32>
    %71 = arith.addf %70, %37 : vector<8x8xf32>
    %cst_26 = arith.constant dense<0xFF800000> : vector<8xf32>
    %72 = vector.multi_reduction <maximumf>, %71, %cst_26 [1] : vector<8x8xf32> to vector<8xf32>
    %73 = vector.shape_cast %72 : vector<8xf32> to vector<8x1xf32>
    %74 = vector.broadcast %73 : vector<8x1xf32> to vector<8x8xf32>
    %75 = arith.subf %71, %74 : vector<8x8xf32>
    %76 = math.exp %75 : vector<8x8xf32>
    %cst_27 = arith.constant dense<0.000000e+00> : vector<8xf32>
    %77 = vector.multi_reduction <add>, %76, %cst_27 [1] : vector<8x8xf32> to vector<8xf32>
    %78 = vector.shape_cast %77 : vector<8xf32> to vector<8x1xf32>
    %79 = tpu.reciprocal %78 {approx = true} : vector<8x1xf32> -> vector<8x1xf32>
    %80 = arith.truncf %76 : vector<8x8xf32> to vector<8x8xbf16>
    %cst_28 = arith.constant dense<0.000000e+00> : vector<8x8xf32>
    %81 = tpu.matmul %80, %69, %cst_28 {dimension_numbers = #tpu.dot_dimension_numbers<[1], [0], [0], [1], [0, 0, 1, 1], [], []>} : vector<8x8xbf16>, vector<8x8xbf16>, vector<8x8xf32> -> vector<8x8xf32>
    %82 = vector.broadcast %79 : vector<8x1xf32> to vector<8x8xf32>
    %83 = arith.mulf %81, %82 : vector<8x8xf32>
    %84 = arith.truncf %83 : vector<8x8xf32> to vector<8x8xbf16>
    %c0_29 = arith.constant 0 : index
    %c8 = arith.constant 8 : index
    %85 = vector.load %arg9[%c0_29, %c8] : memref<8x32xbf16, #tpu.memory_space<vmem>>, vector<8x8xbf16>
    tpu.vector_store %arg9[%c0_29, %c8], %84 {strides = array<i32>} : memref<8x32xbf16, #tpu.memory_space<vmem>>, vector<8x8xbf16>,
    %86 = vector.extract_strided_slice %31 {offsets = [0, 16], sizes = [8, 8], strides = [1, 1]} : vector<8x96xf32> to vector<8x8xf32>
    %cst_30 = arith.constant 0.353553385 : f32
    %87 = vector.broadcast %cst_30 : f32 to vector<8x8xf32>
    %88 = arith.mulf %86, %87 : vector<8x8xf32>
    %89 = arith.truncf %88 : vector<8x8xf32> to vector<8x8xbf16>
    %90 = vector.extract_strided_slice %31 {offsets = [0, 48], sizes = [8, 8], strides = [1, 1]} : vector<8x96xf32> to vector<8x8xf32>
    %91 = arith.truncf %90 : vector<8x8xf32> to vector<8x8xbf16>
    %92 = vector.extract_strided_slice %31 {offsets = [0, 80], sizes = [8, 8], strides = [1, 1]} : vector<8x96xf32> to vector<8x8xf32>
    %93 = arith.truncf %92 : vector<8x8xf32> to vector<8x8xbf16>
    %cst_31 = arith.constant dense<0.000000e+00> : vector<8x8xf32>
    %94 = tpu.matmul %89, %91, %cst_31 {dimension_numbers = #tpu.dot_dimension_numbers<[1], [1], [0], [0], [0, 0, 1, 0], [], []>} : vector<8x8xbf16>, vector<8x8xbf16>, vector<8x8xf32> -> vector<8x8xf32>
    %95 = arith.addf %94, %37 : vector<8x8xf32>
    %cst_32 = arith.constant dense<0xFF800000> : vector<8xf32>
    %96 = vector.multi_reduction <maximumf>, %95, %cst_32 [1] : vector<8x8xf32> to vector<8xf32>
    %97 = vector.shape_cast %96 : vector<8xf32> to vector<8x1xf32>
    %98 = vector.broadcast %97 : vector<8x1xf32> to vector<8x8xf32>
    %99 = arith.subf %95, %98 : vector<8x8xf32>
    %100 = math.exp %99 : vector<8x8xf32>
    %cst_33 = arith.constant dense<0.000000e+00> : vector<8xf32>
    %101 = vector.multi_reduction <add>, %100, %cst_33 [1] : vector<8x8xf32> to vector<8xf32>
    %102 = vector.shape_cast %101 : vector<8xf32> to vector<8x1xf32>
    %103 = tpu.reciprocal %102 {approx = true} : vector<8x1xf32> -> vector<8x1xf32>
    %104 = arith.truncf %100 : vector<8x8xf32> to vector<8x8xbf16>
    %cst_34 = arith.constant dense<0.000000e+00> : vector<8x8xf32>
    %105 = tpu.matmul %104, %93, %cst_34 {dimension_numbers = #tpu.dot_dimension_numbers<[1], [0], [0], [1], [0, 0, 1, 1], [], []>} : vector<8x8xbf16>, vector<8x8xbf16>, vector<8x8xf32> -> vector<8x8xf32>
    %106 = vector.broadcast %103 : vector<8x1xf32> to vector<8x8xf32>
    %107 = arith.mulf %105, %106 : vector<8x8xf32>
    %108 = arith.truncf %107 : vector<8x8xf32> to vector<8x8xbf16>
    %c0_35 = arith.constant 0 : index
    %c16 = arith.constant 16 : index
    %109 = vector.load %arg9[%c0_35, %c16] : memref<8x32xbf16, #tpu.memory_space<vmem>>, vector<8x8xbf16>
    tpu.vector_store %arg9[%c0_35, %c16], %108 {strides = array<i32>} : memref<8x32xbf16, #tpu.memory_space<vmem>>, vector<8x8xbf16>,
    %110 = vector.extract_strided_slice %31 {offsets = [0, 24], sizes = [8, 8], strides = [1, 1]} : vector<8x96xf32> to vector<8x8xf32>
    %cst_36 = arith.constant 0.353553385 : f32
    %111 = vector.broadcast %cst_36 : f32 to vector<8x8xf32>
    %112 = arith.mulf %110, %111 : vector<8x8xf32>
    %113 = arith.truncf %112 : vector<8x8xf32> to vector<8x8xbf16>
    %114 = vector.extract_strided_slice %31 {offsets = [0, 56], sizes = [8, 8], strides = [1, 1]} : vector<8x96xf32> to vector<8x8xf32>
    %115 = arith.truncf %114 : vector<8x8xf32> to vector<8x8xbf16>
    %116 = vector.extract_strided_slice %31 {offsets = [0, 88], sizes = [8, 8], strides = [1, 1]} : vector<8x96xf32> to vector<8x8xf32>
    %117 = arith.truncf %116 : vector<8x8xf32> to vector<8x8xbf16>
    %cst_37 = arith.constant dense<0.000000e+00> : vector<8x8xf32>
    %118 = tpu.matmul %113, %115, %cst_37 {dimension_numbers = #tpu.dot_dimension_numbers<[1], [1], [0], [0], [0, 0, 1, 0], [], []>} : vector<8x8xbf16>, vector<8x8xbf16>, vector<8x8xf32> -> vector<8x8xf32>
    %119 = arith.addf %118, %37 : vector<8x8xf32>
    %cst_38 = arith.constant dense<0xFF800000> : vector<8xf32>
    %120 = vector.multi_reduction <maximumf>, %119, %cst_38 [1] : vector<8x8xf32> to vector<8xf32>
    %121 = vector.shape_cast %120 : vector<8xf32> to vector<8x1xf32>
    %122 = vector.broadcast %121 : vector<8x1xf32> to vector<8x8xf32>
    %123 = arith.subf %119, %122 : vector<8x8xf32>
    %124 = math.exp %123 : vector<8x8xf32>
    %cst_39 = arith.constant dense<0.000000e+00> : vector<8xf32>
    %125 = vector.multi_reduction <add>, %124, %cst_39 [1] : vector<8x8xf32> to vector<8xf32>
    %126 = vector.shape_cast %125 : vector<8xf32> to vector<8x1xf32>
    %127 = tpu.reciprocal %126 {approx = true} : vector<8x1xf32> -> vector<8x1xf32>
    %128 = arith.truncf %124 : vector<8x8xf32> to vector<8x8xbf16>
    %cst_40 = arith.constant dense<0.000000e+00> : vector<8x8xf32>
    %129 = tpu.matmul %128, %117, %cst_40 {dimension_numbers = #tpu.dot_dimension_numbers<[1], [0], [0], [1], [0, 0, 1, 1], [], []>} : vector<8x8xbf16>, vector<8x8xbf16>, vector<8x8xf32> -> vector<8x8xf32>
    %130 = vector.broadcast %127 : vector<8x1xf32> to vector<8x8xf32>
    %131 = arith.mulf %129, %130 : vector<8x8xf32>
    %132 = arith.truncf %131 : vector<8x8xf32> to vector<8x8xbf16>
    %c0_41 = arith.constant 0 : index
    %c24 = arith.constant 24 : index
    %133 = vector.load %arg9[%c0_41, %c24] : memref<8x32xbf16, #tpu.memory_space<vmem>>, vector<8x8xbf16>
    tpu.vector_store %arg9[%c0_41, %c24], %132 {strides = array<i32>} : memref<8x32xbf16, #tpu.memory_space<vmem>>, vector<8x8xbf16>,
    %c0_42 = arith.constant 0 : index
    %c0_43 = arith.constant 0 : index
    %134 = vector.load %arg9[%c0_42, %c0_43] : memref<8x32xbf16, #tpu.memory_space<vmem>>, vector<8x32xbf16>
    %c0_44 = arith.constant 0 : index
    %c0_45 = arith.constant 0 : index
    %135 = vector.load %arg6[%c0_44, %c0_45] : memref<32x32xbf16, #tpu.memory_space<vmem>>, vector<32x32xbf16>
    %cst_46 = arith.constant dense<0.000000e+00> : vector<8x32xf32>
    %136 = tpu.matmul %134, %135, %cst_46 {dimension_numbers = #tpu.dot_dimension_numbers<[1], [0], [0], [1], [0, 0, 1, 1], [], []>} : vector<8x32xbf16>, vector<32x32xbf16>, vector<8x32xf32> -> vector<8x32xf32>
    %137 = arith.addf %1, %136 : vector<8x32xf32>
    %c0_47 = arith.constant 0 : index
    %c0_48 = arith.constant 0 : index
    %138 = vector.load %arg7[%c0_47, %c0_48] : memref<1x32xf32, #tpu.memory_space<vmem>>, vector<1x32xf32>
    %139 = vector.broadcast %138 : vector<1x32xf32> to vector<8x32xf32>
    %140 = arith.addf %137, %139 : vector<8x32xf32>
    %c0_49 = arith.constant 0 : index
    %c0_50 = arith.constant 0 : index
    %c0_51 = arith.constant 0 : index
    %141 = vector.load %arg8[%c0_49, %c0_50, %c0_51] : memref<1x8x32xf32, #tpu.memory_space<vmem>>, vector<1x8x32xf32>
    %142 = vector.shape_cast %141 : vector<1x8x32xf32> to vector<8x32xf32>
    %143 = vector.shape_cast %140 : vector<8x32xf32> to vector<1x8x32xf32>
    tpu.vector_store %arg8[%c0_49, %c0_50, %c0_51], %143 {strides = array<i32>} : memref<1x8x32xf32, #tpu.memory_space<vmem>>, vector<1x8x32xf32>,
    return
  }
  func.func @transform_0(%arg0: i32) -> (i32, i32, i32) {
    %c0_i32 = arith.constant 0 : i32
    %c0_i32_0 = arith.constant 0 : i32
    %c0_i32_1 = arith.constant 0 : i32
    return %arg0, %c0_i32, %c0_i32_0 : i32, i32, i32
  }
  func.func @transform_1(%arg0: i32) -> (i32, i32) {
    %c0_i32 = arith.constant 0 : i32
    %c0_i32_0 = arith.constant 0 : i32
    %c0_i32_1 = arith.constant 0 : i32
    return %c0_i32, %c0_i32_0 : i32, i32
  }
  func.func @transform_2(%arg0: i32) -> (i32, i32) {
    %c0_i32 = arith.constant 0 : i32
    %c0_i32_0 = arith.constant 0 : i32
    %c0_i32_1 = arith.constant 0 : i32
    return %c0_i32, %c0_i32_0 : i32, i32
  }
  func.func @transform_3(%arg0: i32) -> (i32, i32) {
    %c0_i32 = arith.constant 0 : i32
    %c0_i32_0 = arith.constant 0 : i32
    %c0_i32_1 = arith.constant 0 : i32
    return %c0_i32, %c0_i32_0 : i32, i32
  }
  func.func @transform_4(%arg0: i32) -> (i32, i32) {
    %c0_i32 = arith.constant 0 : i32
    %c0_i32_0 = arith.constant 0 : i32
    %c0_i32_1 = arith.constant 0 : i32
    return %c0_i32, %c0_i32_0 : i32, i32
  }
  func.func @transform_5(%arg0: i32) -> (i32, i32) {
    %c0_i32 = arith.constant 0 : i32
    %c0_i32_0 = arith.constant 0 : i32
    %c0_i32_1 = arith.constant 0 : i32
    return %c0_i32, %c0_i32_0 : i32, i32
  }
  func.func @transform_6(%arg0: i32) -> (i32, i32) {
    %c0_i32 = arith.constant 0 : i32
    %c0_i32_0 = arith.constant 0 : i32
    %c0_i32_1 = arith.constant 0 : i32
    return %c0_i32, %c0_i32_0 : i32, i32
  }
  func.func @transform_7(%arg0: i32) -> (i32, i32, i32) {
    %c0_i32 = arith.constant 0 : i32
    %c0_i32_0 = arith.constant 0 : i32
    %c0_i32_1 = arith.constant 0 : i32
    return %arg0, %c0_i32, %c0_i32_0 : i32, i32, i32
  }
}

</mosaic_0001>

<llo_original>
// kernel: tpu_custom_call.1
$region0: #{tpu_custom_call.1}
  #allocation0 [shape = 'u32[]', space=smem, size = 0x4, offset = 0x4, fixed_abs, tag = 'smem constant byte address 0x4 - core index']
  #allocation1 [shape = 'u32[72,128]{1,0:T(1,128)}', space=vmem, size = 0x9000, scoped, tag = 'internal scratch']
  #allocation2 [shape = 'bf16[8,32]{1,0:T(8,128)(2,1)}', space=vmem, size = 0x800, scoped, tag = 'scratch operand']
  %s0 = inlined_call_operand.hbm [shape: f32[2,8,32], index: 0, kind: input, shape index: {}]
  %s1 = inlined_call_operand.hbm [shape: f32[1,32], index: 1, kind: input, shape index: {}]
  %s2 = inlined_call_operand.vmem [shape: f32[1,32], index: 2, kind: input, shape index: {}]
  %s3 = inlined_call_operand.hbm [shape: bf16[32,96], index: 3, kind: input, shape index: {}]
  %s4 = inlined_call_operand.vmem [shape: f32[1,96], index: 4, kind: input, shape index: {}]
  %s5 = inlined_call_operand.hbm [shape: bf16[32,32], index: 5, kind: input, shape index: {}]
  %s6 = inlined_call_operand.vmem [shape: f32[1,32], index: 6, kind: input, shape index: {}]
  %s7 = inlined_call_operand.hbm [shape: f32[2,8,32], index: 7, kind: output, shape index: {}]
  %s8 = sld [smem:[#allocation0]]
  $region77: #{tpu_custom_call.1} parent=0
    _
  %s10 = ssub.s32 1, %s8
  %s11 = scalar_select 0, %s10, %s8
  $region1: #{tpu_custom_call.1} parent=0
    #allocation3 [shape = 'u8[8192]{0}', space=vmem, size = 0x2000, scoped, tag = 'input window, operand 0']
    #allocation4 [shape = 's32[2]{0}', space=sflag, size = 0x8, scoped, tag = 'scoped memory for tpu_custom_call.1']
    #allocation5 [shape = 's32[2]{0}', space=sflag, size = 0x8, scoped, tag = 'scoped memory for tpu_custom_call.1']
    #allocation6 [shape = 'u8[512]{0}', space=vmem, size = 0x400, scoped, tag = 'input window, operand 1, single buffered']
    #allocation7 [shape = 's32[1]{0}', space=sflag, size = 0x4, scoped, tag = 'scoped memory for tpu_custom_call.1']
    #allocation8 [shape = 'u8[8192]{0}', space=vmem, size = 0x2000, scoped, tag = 'input window, operand 3, single buffered']
    #allocation9 [shape = 'u8[8192]{0}', space=vmem, size = 0x2000, scoped, tag = 'input window, operand 5, single buffered']
    #allocation10 [shape = 's32[1]{0}', space=sflag, size = 0x4, scoped, tag = 'scoped memory for tpu_custom_call.1']
    #allocation11 [shape = 'u8[8192]{0}', space=vmem, size = 0x2000, scoped, tag = 'output window, operand 0']
    %12 = vsyncpa [#allocation4], 0
    %s13 = scalar_lea.sflag [#allocation4], 1
    %14 = vsyncpa %s13, 0
    %15 = vsyncpa [#allocation7], 0
    %16 = vsyncpa [#allocation10], 0
    %17 = vsyncpa [#allocation5], 0
    %s18 = scalar_lea.sflag [#allocation5], 1
    %19 = vsyncpa %s18, 0
    loop: start=0, step=1, limit=4
    $region2: #{tpu_custom_call.1} parent=1 // loop_pre_header
      _
    $region3: #{tpu_custom_call.1} parent=1 // loop_header
      %s21 = sphi 0, %s25
      %p22 = scmp.ge.s32.totalorder %s21, 4
      %s31 = sphi 0, %s33
      %s34 = sphi 0, %s31
      %s35 = sphi 0, %s34
      %s51 = sphi 0, %s35
      %s55 = sphi 0, %s55
      %s57 = sphi 0, %s55
      %s58 = sphi 0, %s57
      %s72 = sphi 0, %s58
      %s76 = sphi 0, %s76
      %s78 = sphi 0, %s76
      %s79 = sphi 0, %s78
      %s93 = sphi 0, %s79
      %s97 = sphi 0, %s97
      %s99 = sphi 0, %s97
      %s100 = sphi 0, %s99
      %s114 = sphi 0, %s100
      %s118 = sphi 0, %s118
      %s120 = sphi 0, %s118
      %s121 = sphi 0, %s120
      %s135 = sphi 0, %s121
      %s139 = sphi 0, %s139
      %s141 = sphi 0, %s139
      %s142 = sphi 0, %s141
      %s156 = sphi 0, %s142
      %s160 = sphi 0, %s160
      %s162 = sphi 0, %s160
      %s163 = sphi 0, %s162
      %s177 = sphi 0, %s163
      %s183 = sphi 0, %s185
      %s186 = sphi 0, %s183
      %s187 = sphi 0, %s186
      %s203 = sphi 0, %s187
    $region4: #{tpu_custom_call.1} parent=1 // loop_header_branch
      %24 = sbr.rel (%p22) target = $region8
    $region5: #{tpu_custom_call.1} parent=1 // loop_body
      %s26 = ssub.s32 %s21, 1
      %s27 = ssub.s32 %s21, 2
      %s28 = sadd.s32 %s21, 1
      %s29 = ssub.s32 %s21, %s28
      %p30 = scmp.eq.s32.totalorder %s29, 0
      %s32 = sadd.s32 %s31, 1
      %s33 = scalar_select %p30, %s31, %s32
      %p36 = pneg %p30
      %p37 = scmp.eq.s32.totalorder %s21, 1
      %p38 = por %p36, %p37
      %p39 = scmp.ne.s32.totalorder %s31, %s34
      %p40 = scmp.eq.s32.totalorder %s21, 0
      %p41 = por %p39, %p40
      %p42 = scmp.ne.s32.totalorder %s31, %s34
      %p43 = scmp.eq.s32.totalorder %s26, 1
      %p44 = por %p42, %p43
      %p45 = scmp.ne.s32.totalorder %s34, %s35
      %p46 = scmp.eq.s32.totalorder %s26, 0
      %p47 = por %p45, %p46
      %p48 = scmp.ne.s32.totalorder %s34, %s35
      %p49 = scmp.eq.s32.totalorder %s27, 1
      %p50 = por %p48, %p49
      %p52 = scmp.ne.s32.totalorder %s35, %s51
      %p53 = scmp.eq.s32.totalorder %s27, 0
      %p54 = por %p52, %p53
      %s56 = sadd.s32 %s55, 1
      %p59 = scmp.eq.s32.totalorder %s21, 1
      %p60 = scmp.ne.s32.totalorder %s55, %s57
      %p61 = scmp.eq.s32.totalorder %s21, 0
      %p62 = por %p60, %p61
      %p63 = scmp.ne.s32.totalorder %s55, %s57
      %p64 = scmp.eq.s32.totalorder %s26, 1
      %p65 = por %p63, %p64
      %p66 = scmp.ne.s32.totalorder %s57, %s58
      %p67 = scmp.eq.s32.totalorder %s26, 0
      %p68 = por %p66, %p67
      %p69 = scmp.ne.s32.totalorder %s57, %s58
      %p70 = scmp.eq.s32.totalorder %s27, 1
      %p71 = por %p69, %p70
      %p73 = scmp.ne.s32.totalorder %s58, %s72
      %p74 = scmp.eq.s32.totalorder %s27, 0
      %p75 = por %p73, %p74
      %s77 = sadd.s32 %s76, 1
      %p80 = scmp.eq.s32.totalorder %s21, 1
      %p81 = scmp.ne.s32.totalorder %s76, %s78
      %p82 = scmp.eq.s32.totalorder %s21, 0
      %p83 = por %p81, %p82
      %p84 = scmp.ne.s32.totalorder %s76, %s78
      %p85 = scmp.eq.s32.totalorder %s26, 1
      %p86 = por %p84, %p85
      %p87 = scmp.ne.s32.totalorder %s78, %s79
      %p88 = scmp.eq.s32.totalorder %s26, 0
      %p89 = por %p87, %p88
      %p90 = scmp.ne.s32.totalorder %s78, %s79
      %p91 = scmp.eq.s32.totalorder %s27, 1
      %p92 = por %p90, %p91
      %p94 = scmp.ne.s32.totalorder %s79, %s93
      %p95 = scmp.eq.s32.totalorder %s27, 0
      %p96 = por %p94, %p95
      %s98 = sadd.s32 %s97, 1
      %p101 = scmp.eq.s32.totalorder %s21, 1
      %p102 = scmp.ne.s32.totalorder %s97, %s99
      %p103 = scmp.eq.s32.totalorder %s21, 0
      %p104 = por %p102, %p103
      %p105 = scmp.ne.s32.totalorder %s97, %s99
      %p106 = scmp.eq.s32.totalorder %s26, 1
      %p107 = por %p105, %p106
      %p108 = scmp.ne.s32.totalorder %s99, %s100
      %p109 = scmp.eq.s32.totalorder %s26, 0
      %p110 = por %p108, %p109
      %p111 = scmp.ne.s32.totalorder %s99, %s100
      %p112 = scmp.eq.s32.totalorder %s27, 1
      %p113 = por %p111, %p112
      %p115 = scmp.ne.s32.totalorder %s100, %s114
      %p116 = scmp.eq.s32.totalorder %s27, 0
      %p117 = por %p115, %p116
      %s119 = sadd.s32 %s118, 1
      %p122 = scmp.eq.s32.totalorder %s21, 1
      %p123 = scmp.ne.s32.totalorder %s118, %s120
      %p124 = scmp.eq.s32.totalorder %s21, 0
      %p125 = por %p123, %p124
      %p126 = scmp.ne.s32.totalorder %s118, %s120
      %p127 = scmp.eq.s32.totalorder %s26, 1
      %p128 = por %p126, %p127
      %p129 = scmp.ne.s32.totalorder %s120, %s121
      %p130 = scmp.eq.s32.totalorder %s26, 0
      %p131 = por %p129, %p130
      %p132 = scmp.ne.s32.totalorder %s120, %s121
      %p133 = scmp.eq.s32.totalorder %s27, 1
      %p134 = por %p132, %p133
      %p136 = scmp.ne.s32.totalorder %s121, %s135
      %p137 = scmp.eq.s32.totalorder %s27, 0
      %p138 = por %p136, %p137
      %s140 = sadd.s32 %s139, 1
      %p143 = scmp.eq.s32.totalorder %s21, 1
      %p144 = scmp.ne.s32.totalorder %s139, %s141
      %p145 = scmp.eq.s32.totalorder %s21, 0
      %p146 = por %p144, %p145
      %p147 = scmp.ne.s32.totalorder %s139, %s141
      %p148 = scmp.eq.s32.totalorder %s26, 1
      %p149 = por %p147, %p148
      %p150 = scmp.ne.s32.totalorder %s141, %s142
      %p151 = scmp.eq.s32.totalorder %s26, 0
      %p152 = por %p150, %p151
      %p153 = scmp.ne.s32.totalorder %s141, %s142
      %p154 = scmp.eq.s32.totalorder %s27, 1
      %p155 = por %p153, %p154
      %p157 = scmp.ne.s32.totalorder %s142, %s156
      %p158 = scmp.eq.s32.totalorder %s27, 0
      %p159 = por %p157, %p158
      %s161 = sadd.s32 %s160, 1
      %p164 = scmp.eq.s32.totalorder %s21, 1
      %p165 = scmp.ne.s32.totalorder %s160, %s162
      %p166 = scmp.eq.s32.totalorder %s21, 0
      %p167 = por %p165, %p166
      %p168 = scmp.ne.s32.totalorder %s160, %s162
      %p169 = scmp.eq.s32.totalorder %s26, 1
      %p170 = por %p168, %p169
      %p171 = scmp.ne.s32.totalorder %s162, %s163
      %p172 = scmp.eq.s32.totalorder %s26, 0
      %p173 = por %p171, %p172
      %p174 = scmp.ne.s32.totalorder %s162, %s163
      %p175 = scmp.eq.s32.totalorder %s27, 1
      %p176 = por %p174, %p175
      %p178 = scmp.ne.s32.totalorder %s163, %s177
      %p179 = scmp.eq.s32.totalorder %s27, 0
      %p180 = por %p178, %p179
      %s181 = ssub.s32 %s21, %s28
      %p182 = scmp.eq.s32.totalorder %s181, 0
      %s184 = sadd.s32 %s183, 1
      %s185 = scalar_select %p182, %s183, %s184
      %p188 = pneg %p182
      %p189 = scmp.eq.s32.totalorder %s21, 1
      %p190 = por %p188, %p189
      %p191 = scmp.ne.s32.totalorder %s183, %s186
      %p192 = scmp.eq.s32.totalorder %s21, 0
      %p193 = por %p191, %p192
      %p194 = scmp.ne.s32.totalorder %s183, %s186
      %p195 = scmp.eq.s32.totalorder %s26, 1
      %p196 = por %p194, %p195
      %p197 = scmp.ne.s32.totalorder %s186, %s187
      %p198 = scmp.eq.s32.totalorder %s26, 0
      %p199 = por %p197, %p198
      %p200 = scmp.ne.s32.totalorder %s186, %s187
      %p201 = scmp.eq.s32.totalorder %s27, 1
      %p202 = por %p200, %p201
      %p204 = scmp.ne.s32.totalorder %s187, %s203
      %p205 = scmp.eq.s32.totalorder %s27, 0
      %p206 = por %p204, %p205
      %p207 = scmp.le.s32.totalorder 1, %s21
      %p208 = scmp.lt.s32.totalorder %s21, 3
      %p209 = pnand %p207, %p208
      %p210 = pneg %p209
      // Predicated region
      $region9: #{tpu_custom_call.1} parent=5 // pred_check
        _
      $region10: #{tpu_custom_call.1} parent=5 // pred_check_branch
        %212 = sbr.rel (%p209) target = $region12
      $region11: #{tpu_custom_call.1} parent=5 // pred_region
        %s213 = ssub.s32 %s21, 1
        // Predicated region
        $region13: #{tpu_custom_call.1} parent=11 // pred_check
          %p214 = pneg %p68
        $region14: #{tpu_custom_call.1} parent=11 // pred_check_branch
          %216 = sbr.rel (%p214) target = $region16
        $region15: #{tpu_custom_call.1} parent=11 // pred_region
          %218 = vsyncadd [#allocation7], 0
          %s220 = sshll.u32 %s1, 4
          %s221 = int_to_ptr.hbm [resolvable:$true] %s220
          %s222 = sshll.u32 [#allocation6], 4
          %s223 = int_to_ptr.vmem [resolvable:$true] %s222
          %225 = dma.hbm_to_vmem [thread:$0]  %s221, 16, %s223, [#allocation7]
        $region16: #{tpu_custom_call.1} parent=11 // pred_fallthru
          _
        // Predicated region
        $region17: #{tpu_custom_call.1} parent=11 // pred_check
          %p226 = pneg %p89
        $region18: #{tpu_custom_call.1} parent=11 // pred_check_branch
          %228 = sbr.rel (%p226) target = $region20
        $region19: #{tpu_custom_call.1} parent=11 // pred_region
          _
        $region20: #{tpu_custom_call.1} parent=11 // pred_fallthru
          _
        // Predicated region
        $region21: #{tpu_custom_call.1} parent=11 // pred_check
          %p229 = pneg %p110
        $region22: #{tpu_custom_call.1} parent=11 // pred_check_branch
          %231 = sbr.rel (%p229) target = $region24
        $region23: #{tpu_custom_call.1} parent=11 // pred_region
          %233 = vsyncadd [#allocation7], 0
          %s234 = sshll.u32 %s3, 4
          %s235 = int_to_ptr.hbm [resolvable:$true] %s234
          %s236 = sshll.u32 [#allocation8], 4
          %s237 = int_to_ptr.vmem [resolvable:$true] %s236
          %242 = dma.hbm_to_vmem [thread:$0]  %s235, 256, %s237, [#allocation7], 64, 64, 4
        $region24: #{tpu_custom_call.1} parent=11 // pred_fallthru
          _
        // Predicated region
        $region25: #{tpu_custom_call.1} parent=11 // pred_check
          %p243 = pneg %p131
        $region26: #{tpu_custom_call.1} parent=11 // pred_check_branch
          %245 = sbr.rel (%p243) target = $region28
        $region27: #{tpu_custom_call.1} parent=11 // pred_region
          _
        $region28: #{tpu_custom_call.1} parent=11 // pred_fallthru
          _
        // Predicated region
        $region29: #{tpu_custom_call.1} parent=11 // pred_check
          %p246 = pneg %p152
        $region30: #{tpu_custom_call.1} parent=11 // pred_check_branch
          %248 = sbr.rel (%p246) target = $region32
        $region31: #{tpu_custom_call.1} parent=11 // pred_region
          %250 = vsyncadd [#allocation10], 0
          %s251 = sshll.u32 %s5, 4
          %s252 = int_to_ptr.hbm [resolvable:$true] %s251
          %s253 = sshll.u32 [#allocation9], 4
          %s254 = int_to_ptr.vmem [resolvable:$true] %s253
          %259 = dma.hbm_to_vmem [thread:$0]  %s252, 256, %s254, [#allocation10], 64, 64, 4
        $region32: #{tpu_custom_call.1} parent=11 // pred_fallthru
          _
        // Predicated region
        $region33: #{tpu_custom_call.1} parent=11 // pred_check
          %p260 = pneg %p173
        $region34: #{tpu_custom_call.1} parent=11 // pred_check_branch
          %262 = sbr.rel (%p260) target = $region36
        $region35: #{tpu_custom_call.1} parent=11 // pred_region
          _
        $region36: #{tpu_custom_call.1} parent=11 // pred_fallthru
          _
      $region12: #{tpu_custom_call.1} parent=5 // pred_fallthru
        _
      %p263 = scmp.lt.s32.totalorder %s21, 2
      // Predicated region
      $region37: #{tpu_custom_call.1} parent=5 // pred_check
        %p264 = pneg %p263
      $region38: #{tpu_custom_call.1} parent=5 // pred_check_branch
        %266 = sbr.rel (%p264) target = $region40
      $region39: #{tpu_custom_call.1} parent=5 // pred_region
        // Predicated region
        $region41: #{tpu_custom_call.1} parent=39 // pred_check
          %p267 = pneg %p41
        $region42: #{tpu_custom_call.1} parent=39 // pred_check_branch
          %269 = sbr.rel (%p267) target = $region44
        $region43: #{tpu_custom_call.1} parent=39 // pred_region
          %s270 = sand.u32 %s31, 1
          %s271 = scalar_lea.sflag [#allocation4], %s270
          %s272 = sand.u32 %s31, 1
          %s273 = smul.addr %s272, 8
          %s274 = scalar_lea.vmem [#allocation3], %s273
          %276 = vsyncadd %s271, 0
          %s277 = smul.addr %s21, 8
          %s278 = scalar_lea.hbm %s0, %s277
          %s280 = sshll.u32 %s278, 4
          %s281 = int_to_ptr.hbm [resolvable:$true] %s280
          %s282 = sshll.u32 %s274, 4
          %s283 = int_to_ptr.vmem [resolvable:$true] %s282
          %285 = dma.hbm_to_vmem [thread:$0]  %s281, 128, %s283, %s271
        $region44: #{tpu_custom_call.1} parent=39 // pred_fallthru
          _
      $region40: #{tpu_custom_call.1} parent=5 // pred_fallthru
        _
      %p286 = scmp.le.s32.totalorder 1, %s21
      %p287 = scmp.lt.s32.totalorder %s21, 3
      %p288 = pnand %p286, %p287
      %p289 = pneg %p288
      // Predicated region
      $region45: #{tpu_custom_call.1} parent=5 // pred_check
        _
      $region46: #{tpu_custom_call.1} parent=5 // pred_check_branch
        %291 = sbr.rel (%p288) target = $region48
      $region47: #{tpu_custom_call.1} parent=5 // pred_region
        %s292 = ssub.s32 %s21, 1
        %s293 = sand.u32 %s34, 1
        %s294 = scalar_lea.sflag [#allocation4], %s293
        %s295 = sand.u32 %s34, 1
        %s296 = smul.addr %s295, 8
        %s297 = scalar_lea.vmem [#allocation3], %s296
        // Predicated region
        $region49: #{tpu_custom_call.1} parent=47 // pred_check
          %p298 = pneg %p47
        $region50: #{tpu_custom_call.1} parent=47 // pred_check_branch
          %300 = sbr.rel (%p298) target = $region52
        $region51: #{tpu_custom_call.1} parent=47 // pred_region
          %302 = dma.done %s294, 128
        $region52: #{tpu_custom_call.1} parent=47 // pred_fallthru
          _
        // Predicated region
        $region53: #{tpu_custom_call.1} parent=47 // pred_check
          %p303 = pneg %p68
        $region54: #{tpu_custom_call.1} parent=47 // pred_check_branch
          %305 = sbr.rel (%p303) target = $region56
        $region55: #{tpu_custom_call.1} parent=47 // pred_region
          %307 = dma.done [#allocation7], 16
        $region56: #{tpu_custom_call.1} parent=47 // pred_fallthru
          _
        // Predicated region
        $region57: #{tpu_custom_call.1} parent=47 // pred_check
          %p308 = pneg %p110
        $region58: #{tpu_custom_call.1} parent=47 // pred_check_branch
          %310 = sbr.rel (%p308) target = $region60
        $region59: #{tpu_custom_call.1} parent=47 // pred_region
          %312 = dma.done [#allocation7], 256
        $region60: #{tpu_custom_call.1} parent=47 // pred_fallthru
          _
        // Predicated region
        $region61: #{tpu_custom_call.1} parent=47 // pred_check
          %p313 = pneg %p152
        $region62: #{tpu_custom_call.1} parent=47 // pred_check_branch
          %315 = sbr.rel (%p313) target = $region64
        $region63: #{tpu_custom_call.1} parent=47 // pred_region
          %317 = dma.done [#allocation10], 256
        $region64: #{tpu_custom_call.1} parent=47 // pred_fallthru
          _
        %s318 = sand.u32 %s34, 1
        %s319 = scalar_lea.sflag [#allocation4], %s318
        %s320 = sand.u32 %s34, 1
        %s321 = smul.addr %s320, 8
        %s322 = scalar_lea.vmem [#allocation3], %s321
        %p323 = pneg %p47
        %p324 = pneg %p44
        %p325 = pneg %p68
        %p326 = pneg %p65
        %p327 = pneg %p89
        %p328 = pneg %p86
        %p329 = pneg %p110
        %p330 = pneg %p107
        %p331 = pneg %p131
        %p332 = pneg %p128
        %p333 = pneg %p152
        %p334 = pneg %p149
        %p335 = pneg %p173
        %p336 = pneg %p170
        %p337 = pneg %p199
        %p338 = pneg %p196
        %s339 = sand.u32 %s186, 1
        %s340 = scalar_lea.sflag [#allocation5], %s339
        %s341 = sand.u32 %s186, 1
        %s342 = smul.addr %s341, 8
        %s343 = scalar_lea.vmem [#allocation11], %s342
        %v345 = vld [vmem:[%s297] sm:$0xff]
        %v346 = vld [vmem:[#allocation6] sm:$0x1]
        %v347 = vld [vmem:[%s2] sm:$0x1]
        %vm348 = vcmask 261120
        %v349 = vsel %vm348, %v345, 0.0
        %350 = vadd.xlane.f32.xlu0 %v349
        %v351 = vpop.xlane.xlu0 %350
        %v352 = vrcp.pop 32.0
        %v353 = vmul.f32 32.0, %v352
        %v354 = vsub.f32 1.0, %v353
        %v355 = vmul.f32 %v352, %v354
        %v356 = vadd.f32 %v352, %v355
        %vm357 = vweird.f32 %v352
        %v358 = vsel %vm357, %v352, %v356
        %v359 = vmul.f32 %v351, %v358
        %v360 = vsub.f32 %v345, %v359
        %v361 = vmul.f32 %v360, %v360
        %v362 = vsel %vm348, %v361, 0.0
        %363 = vadd.xlane.f32.xlu0 %v362
        %v364 = vpop.xlane.xlu0 %363
        %v365 = vmul.f32 %v364, %v358
        %v366 = vadd.f32 %v365, 1e-05
        %v367 = vrsqrt.pop %v366
        %v368 = vmul.f32 %v367, %v366
        %v369 = vmul.f32 %v368, %v367
        %v370 = vmul.f32 0.5, %v369
        %v371 = vsub.f32 1.5, %v370
        %v372 = vmul.f32 %v367, %v371
        %vm373 = vweird.f32 %v366
        %vm374 = vweird.f32 %v367
        %vm375 = vmor %vm373, %vm374
        %v376 = vsel %vm375, %v367, %v372
        %v377 = vmul.f32 %v360, %v376
        %v379 = vperm.slane %v346, 0
        %v381 = vmul.f32 %v377, %v379
        %v383 = vperm.slane %v347, 0
        %v385 = vadd.f32 %v381, %v383
        %v386 = vpack.c.bf16 %v385, %v385
        %v387 = vld [vmem:[#allocation8] sm:$0xf]
        %v388 = vld [vmem:[#allocation8 + $0x4] sm:$0xf]
        %v389 = vld [vmem:[#allocation8 + $0x8] sm:$0xf]
        %v390 = vld [vmem:[#allocation8 + $0xc] sm:$0xf]
        %v391 = vld [vmem:[%s4] sm:$0x1]
        %v393 = vperm.slane %v391, 0
        %v399 = vunpack.c.l.b16 %v387
        %v400 = vunpack.c.l.b16 %v388
        %v401 = vunpack.c.l.b16 %v389
        %v402 = vunpack.c.l.b16 %v390
        %v403 = vpack.c.b16 %v400, %v399
        %v404 = vpack.c.b16 %v402, %v401
        %v408 = vsel %vm348, %v386, 0
        %410 = vmatpush.bf16.msra.mxu0 0
        %411 = vmatpush.bf16.msra.mxu0 0
        %412 = vmatpush.bf16.msra.mxu0 0
        %413 = vmatpush.bf16.msra.mxu0 0
        %414 = vmatpush.bf16.msra.mxu0 0
        %415 = vmatpush.bf16.msra.mxu0 0
        %416 = vmatpush.bf16.msra.mxu0 %v404
        %417 = vmatpush.bf16.msra.mxu0 %v403
        %418 = vmatmul.bf16.gmra.mxu0 %v408
        %v419 = vpop.f32.mrf.mxu0
        %v420 = vadd.f32 %v393, %v419
        %v421 = vpop.f32.mrf.mxu0
        %422 = vdwg.mxu0
        %v423 = vlaneseq
        %v424 = vshrl.u32 %v423, 7
        %v425 = vlaneseq
        %v426 = vand.u32 %v425, 127
        %vm427 = vcmp.gt.s32.totalorder %v426, %v424
        %v428 = vsel %vm427, -1e+30, 0.0
        %v429 = vmul.f32 %v420, 0.35355338
        %v430 = vpack.c.bf16 %v429, %v429
        %v431 = vpack.c.bf16 %v420, %v420
        %433 = vrot.lane.b32.xlu0 %v431, 96
        %v434 = vpop.permute.xlu0 %433
        %vm435 = vcmask 64512
        %v437 = vsel %vm435, %v430, 0
        %v440 = vsel %vm435, %v434, 0
        %442 = vmatpush.bf16.xpose.msra.mxu0 0
        %443 = vmatpush.bf16.xpose.msra.mxu0 0
        %444 = vmatpush.bf16.xpose.msra.mxu0 0
        %445 = vmatpush.bf16.xpose.msra.mxu0 0
        %446 = vmatpush.bf16.xpose.msra.mxu0 0
        %447 = vmatpush.bf16.xpose.msra.mxu0 0
        %448 = vmatpush.bf16.xpose.msra.mxu0 0
        %449 = vmatpush.bf16.xpose.msra.mxu0 %v440
        %450 = vmatmul.bf16.gmra.mxu0 %v437
        %v451 = vpop.f32.mrf.mxu0
        %v452 = vadd.f32 %v428, %v451
        %v453 = vpop.f32.mrf.mxu0
        %454 = vdwg.mxu0
        %v455 = vsel %vm435, %v452, -inf
        %456 = vmax.xlane.f32.xlu0 %v455
        %v457 = vpop.xlane.xlu0 %456
        %v458 = vsub.f32 %v452, %v457
        %v459 = vmul.f32 %v458, 1.442695
        %v460 = vpow.pop %v459
        %v461 = vsel %vm435, %v460, 0.0
        %462 = vadd.xlane.f32.xlu0 %v461
        %v463 = vpop.xlane.xlu0 %462
        %v464 = vrcp.pop %v463
        %v465 = vpack.c.bf16 %v460, %v460
        %466 = vrot.lane.b32.xlu0 %v431, 64
        %v467 = vpop.permute.xlu0 %466
        %v469 = vsel %vm435, %v465, 0
        %vm471 = vcmask 1043456
        %v473 = vsel %vm471, %v467, 0
        %475 = vmatpush.bf16.msra.mxu0 0
        %476 = vmatpush.bf16.msra.mxu0 0
        %477 = vmatpush.bf16.msra.mxu0 0
        %478 = vmatpush.bf16.msra.mxu0 0
        %479 = vmatpush.bf16.msra.mxu0 0
        %480 = vmatpush.bf16.msra.mxu0 0
        %481 = vmatpush.bf16.msra.mxu0 0
        %482 = vmatpush.bf16.msra.mxu0 %v473
        %483 = vmatmul.bf16.gmra.mxu0 %v469
        %v484 = vpop.f32.mrf.mxu0
        %v485 = vadd.f32 0.0, %v484
        %v486 = vpop.f32.mrf.mxu0
        %487 = vdwg.mxu0
        %v488 = vmul.f32 %v485, %v464
        %v489 = vpack.c.bf16 %v488, %v488
        %vm490 = vcmask 60416
        %491 = vst.msk [vmem:[#allocation2] sm:$0xf] %vm490, %v489
        %493 = vrot.lane.b32.xlu0 %v430, 120
        %v494 = vpop.permute.xlu0 %493
        %495 = vrot.lane.b32.xlu0 %v431, 88
        %v496 = vpop.permute.xlu0 %495
        %v498 = vsel %vm435, %v494, 0
        %v501 = vsel %vm435, %v496, 0
        %503 = vmatpush.bf16.xpose.msra.mxu0 0
        %504 = vmatpush.bf16.xpose.msra.mxu0 0
        %505 = vmatpush.bf16.xpose.msra.mxu0 0
        %506 = vmatpush.bf16.xpose.msra.mxu0 0
        %507 = vmatpush.bf16.xpose.msra.mxu0 0
        %508 = vmatpush.bf16.xpose.msra.mxu0 0
        %509 = vmatpush.bf16.xpose.msra.mxu0 0
        %510 = vmatpush.bf16.xpose.msra.mxu0 %v501
        %511 = vmatmul.bf16.gmra.mxu0 %v498
        %v512 = vpop.f32.mrf.mxu0
        %v513 = vadd.f32 %v428, %v512
        %v514 = vpop.f32.mrf.mxu0
        %515 = vdwg.mxu0
        %v516 = vsel %vm435, %v513, -inf
        %517 = vmax.xlane.f32.xlu0 %v516
        %v518 = vpop.xlane.xlu0 %517
        %v519 = vsub.f32 %v513, %v518
        %v520 = vmul.f32 %v519, 1.442695
        %v521 = vpow.pop %v520
        %v522 = vsel %vm435, %v521, 0.0
        %523 = vadd.xlane.f32.xlu0 %v522
        %v524 = vpop.xlane.xlu0 %523
        %v525 = vrcp.pop %v524
        %v526 = vpack.c.bf16 %v521, %v521
        %527 = vrot.lane.b32.xlu0 %v431, 56
        %v528 = vpop.permute.xlu0 %527
        %v530 = vsel %vm435, %v526, 0
        %v533 = vsel %vm471, %v528, 0
        %535 = vmatpush.bf16.msra.mxu0 0
        %536 = vmatpush.bf16.msra.mxu0 0
        %537 = vmatpush.bf16.msra.mxu0 0
        %538 = vmatpush.bf16.msra.mxu0 0
        %539 = vmatpush.bf16.msra.mxu0 0
        %540 = vmatpush.bf16.msra.mxu0 0
        %541 = vmatpush.bf16.msra.mxu0 0
        %542 = vmatpush.bf16.msra.mxu0 %v533
        %543 = vmatmul.bf16.gmra.mxu0 %v530
        %v544 = vpop.f32.mrf.mxu0
        %v545 = vadd.f32 0.0, %v544
        %v546 = vpop.f32.mrf.mxu0
        %547 = vdwg.mxu0
        %v548 = vmul.f32 %v545, %v525
        %v549 = vpack.c.bf16 %v548, %v548
        %551 = vrot.lane.b32.xlu0 %v549, 8
        %v552 = vpop.permute.xlu0 %551
        %vm554 = vcmask 126016
        %555 = vst.msk [vmem:[#allocation2] sm:$0xf] %vm554, %v552
        %556 = vrot.lane.b32.xlu0 %v430, 112
        %v557 = vpop.permute.xlu0 %556
        %558 = vrot.lane.b32.xlu0 %v431, 80
        %v559 = vpop.permute.xlu0 %558
        %v561 = vsel %vm435, %v557, 0
        %v564 = vsel %vm435, %v559, 0
        %566 = vmatpush.bf16.xpose.msra.mxu0 0
        %567 = vmatpush.bf16.xpose.msra.mxu0 0
        %568 = vmatpush.bf16.xpose.msra.mxu0 0
        %569 = vmatpush.bf16.xpose.msra.mxu0 0
        %570 = vmatpush.bf16.xpose.msra.mxu0 0
        %571 = vmatpush.bf16.xpose.msra.mxu0 0
        %572 = vmatpush.bf16.xpose.msra.mxu0 0
        %573 = vmatpush.bf16.xpose.msra.mxu0 %v564
        %574 = vmatmul.bf16.gmra.mxu0 %v561
        %v575 = vpop.f32.mrf.mxu0
        %v576 = vadd.f32 %v428, %v575
        %v577 = vpop.f32.mrf.mxu0
        %578 = vdwg.mxu0
        %v579 = vsel %vm435, %v576, -inf
        %580 = vmax.xlane.f32.xlu0 %v579
        %v581 = vpop.xlane.xlu0 %580
        %v582 = vsub.f32 %v576, %v581
        %v583 = vmul.f32 %v582, 1.442695
        %v584 = vpow.pop %v583
        %v585 = vsel %vm435, %v584, 0.0
        %586 = vadd.xlane.f32.xlu0 %v585
        %v587 = vpop.xlane.xlu0 %586
        %v588 = vrcp.pop %v587
        %v589 = vpack.c.bf16 %v584, %v584
        %590 = vrot.lane.b32.xlu0 %v431, 48
        %v591 = vpop.permute.xlu0 %590
        %v593 = vsel %vm435, %v589, 0
        %v596 = vsel %vm471, %v591, 0
        %598 = vmatpush.bf16.msra.mxu0 0
        %599 = vmatpush.bf16.msra.mxu0 0
        %600 = vmatpush.bf16.msra.mxu0 0
        %601 = vmatpush.bf16.msra.mxu0 0
        %602 = vmatpush.bf16.msra.mxu0 0
        %603 = vmatpush.bf16.msra.mxu0 0
        %604 = vmatpush.bf16.msra.mxu0 0
        %605 = vmatpush.bf16.msra.mxu0 %v596
        %606 = vmatmul.bf16.gmra.mxu0 %v593
        %v607 = vpop.f32.mrf.mxu0
        %v608 = vadd.f32 0.0, %v607
        %v609 = vpop.f32.mrf.mxu0
        %610 = vdwg.mxu0
        %v611 = vmul.f32 %v608, %v588
        %v612 = vpack.c.bf16 %v611, %v611
        %614 = vrot.lane.b32.xlu0 %v612, 16
        %v615 = vpop.permute.xlu0 %614
        %vm617 = vcmask 191616
        %618 = vst.msk [vmem:[#allocation2] sm:$0xf] %vm617, %v615
        %619 = vrot.lane.b32.xlu0 %v430, 104
        %v620 = vpop.permute.xlu0 %619
        %621 = vrot.lane.b32.xlu0 %v431, 72
        %v622 = vpop.permute.xlu0 %621
        %v624 = vsel %vm435, %v620, 0
        %v627 = vsel %vm435, %v622, 0
        %629 = vmatpush.bf16.xpose.msra.mxu0 0
        %630 = vmatpush.bf16.xpose.msra.mxu0 0
        %631 = vmatpush.bf16.xpose.msra.mxu0 0
        %632 = vmatpush.bf16.xpose.msra.mxu0 0
        %633 = vmatpush.bf16.xpose.msra.mxu0 0
        %634 = vmatpush.bf16.xpose.msra.mxu0 0
        %635 = vmatpush.bf16.xpose.msra.mxu0 0
        %636 = vmatpush.bf16.xpose.msra.mxu0 %v627
        %637 = vmatmul.bf16.gmra.mxu0 %v624
        %v638 = vpop.f32.mrf.mxu0
        %v639 = vadd.f32 %v428, %v638
        %v640 = vpop.f32.mrf.mxu0
        %641 = vdwg.mxu0
        %v642 = vsel %vm435, %v639, -inf
        %643 = vmax.xlane.f32.xlu0 %v642
        %v644 = vpop.xlane.xlu0 %643
        %v645 = vsub.f32 %v639, %v644
        %v646 = vmul.f32 %v645, 1.442695
        %v647 = vpow.pop %v646
        %v648 = vsel %vm435, %v647, 0.0
        %649 = vadd.xlane.f32.xlu0 %v648
        %v650 = vpop.xlane.xlu0 %649
        %v651 = vrcp.pop %v650
        %v652 = vpack.c.bf16 %v647, %v647
        %653 = vrot.lane.b32.xlu0 %v431, 40
        %v654 = vpop.permute.xlu0 %653
        %v656 = vsel %vm435, %v652, 0
        %v659 = vsel %vm471, %v654, 0
        %661 = vmatpush.bf16.msra.mxu0 0
        %662 = vmatpush.bf16.msra.mxu0 0
        %663 = vmatpush.bf16.msra.mxu0 0
        %664 = vmatpush.bf16.msra.mxu0 0
        %665 = vmatpush.bf16.msra.mxu0 0
        %666 = vmatpush.bf16.msra.mxu0 0
        %667 = vmatpush.bf16.msra.mxu0 0
        %668 = vmatpush.bf16.msra.mxu0 %v659
        %669 = vmatmul.bf16.gmra.mxu0 %v656
        %v670 = vpop.f32.mrf.mxu0
        %v671 = vadd.f32 0.0, %v670
        %v672 = vpop.f32.mrf.mxu0
        %673 = vdwg.mxu0
        %v674 = vmul.f32 %v671, %v651
        %v675 = vpack.c.bf16 %v674, %v674
        %677 = vrot.lane.b32.xlu0 %v675, 24
        %v678 = vpop.permute.xlu0 %677
        %vm680 = vcmask 257216
        %681 = vst.msk [vmem:[#allocation2] sm:$0xf] %vm680, %v678
        %v682 = vld [vmem:[#allocation2] sm:$0xf]
        %v683 = vld [vmem:[#allocation9] sm:$0xf]
        %v684 = vld [vmem:[#allocation9 + $0x4] sm:$0xf]
        %v685 = vld [vmem:[#allocation9 + $0x8] sm:$0xf]
        %v686 = vld [vmem:[#allocation9 + $0xc] sm:$0xf]
        %v691 = vunpack.c.l.b16 %v683
        %v692 = vunpack.c.l.b16 %v684
        %v693 = vunpack.c.l.b16 %v685
        %v694 = vunpack.c.l.b16 %v686
        %v695 = vpack.c.b16 %v692, %v691
        %v696 = vpack.c.b16 %v694, %v693
        %v700 = vsel %vm348, %v682, 0
        %702 = vmatpush.bf16.msra.mxu0 0
        %703 = vmatpush.bf16.msra.mxu0 0
        %704 = vmatpush.bf16.msra.mxu0 0
        %705 = vmatpush.bf16.msra.mxu0 0
        %706 = vmatpush.bf16.msra.mxu0 0
        %707 = vmatpush.bf16.msra.mxu0 0
        %708 = vmatpush.bf16.msra.mxu0 %v696
        %709 = vmatpush.bf16.msra.mxu0 %v695
        %710 = vmatmul.bf16.gmra.mxu0 %v700
        %v711 = vpop.f32.mrf.mxu0
        %v712 = vadd.f32 0.0, %v711
        %v713 = vpop.f32.mrf.mxu0
        %714 = vdwg.mxu0
        %v715 = vadd.f32 %v345, %v712
        %v716 = vld [vmem:[%s6] sm:$0x1]
        %v718 = vperm.slane %v716, 0
        %v720 = vadd.f32 %v715, %v718
        %721 = vst.msk [vmem:[%s343] sm:$0xff] %vm348, %v720
        %s722 = sand.u32 %s186, 1
        %s723 = scalar_lea.sflag [#allocation5], %s722
        %s724 = sand.u32 %s186, 1
        %s725 = smul.addr %s724, 8
        %s726 = scalar_lea.vmem [#allocation11], %s725
        // Predicated region
        $region65: #{tpu_custom_call.1} parent=47 // pred_check
          %p727 = pneg %p196
        $region66: #{tpu_custom_call.1} parent=47 // pred_check_branch
          %729 = sbr.rel (%p727) target = $region68
        $region67: #{tpu_custom_call.1} parent=47 // pred_region
          %731 = vsyncadd %s723, 0
          %s732 = smul.addr %s26, 8
          %s733 = scalar_lea.hbm %s7, %s732
          %s735 = sshll.u32 %s726, 4
          %s736 = int_to_ptr.vmem [resolvable:$true] %s735
          %s737 = sshll.u32 %s733, 4
          %s738 = int_to_ptr.hbm [resolvable:$true] %s737
          %740 = dma.vmem_to_hbm [thread:$0]  %s736, 128, %s738, %s723
        $region68: #{tpu_custom_call.1} parent=47 // pred_fallthru
          _
      $region48: #{tpu_custom_call.1} parent=5 // pred_fallthru
        _
      %p741 = scmp.le.s32.totalorder 2, %s21
      // Predicated region
      $region69: #{tpu_custom_call.1} parent=5 // pred_check
        %p742 = pneg %p741
      $region70: #{tpu_custom_call.1} parent=5 // pred_check_branch
        %744 = sbr.rel (%p742) target = $region72
      $region71: #{tpu_custom_call.1} parent=5 // pred_region
        %s745 = ssub.s32 %s21, 2
        // Predicated region
        $region73: #{tpu_custom_call.1} parent=71 // pred_check
          %p746 = pneg %p202
        $region74: #{tpu_custom_call.1} parent=71 // pred_check_branch
          %748 = sbr.rel (%p746) target = $region76
        $region75: #{tpu_custom_call.1} parent=71 // pred_region
          %s749 = sand.u32 %s187, 1
          %s750 = scalar_lea.sflag [#allocation5], %s749
          %s751 = sand.u32 %s187, 1
          %s752 = smul.addr %s751, 8
          %s753 = scalar_lea.vmem [#allocation11], %s752
          %755 = dma.done %s750, 128
        $region76: #{tpu_custom_call.1} parent=71 // pred_fallthru
          _
      $region72: #{tpu_custom_call.1} parent=5 // pred_fallthru
        _
    $region6: #{tpu_custom_call.1} parent=1 // loop_footer
      %s25 = sadd.s32 1, %s21
    $region7: #{tpu_custom_call.1} parent=1 // loop_footer_branch
      %20 = sbr.rel target = $region3
    $region8: #{tpu_custom_call.1} parent=1 // loop_exit
      _
    %756 = vsyncpa [#allocation4], 1
    %s757 = scalar_lea.sflag [#allocation4], 1
    %758 = vsyncpa %s757, 1
    %759 = vsyncpa [#allocation7], 1
    %760 = vsyncpa [#allocation10], 1
    %761 = vsyncpa [#allocation5], 1
    %s762 = scalar_lea.sflag [#allocation5], 1
    %763 = vsyncpa %s762, 1

</llo_original>
